<compile_context>
chip_gen: v7x
topology: tpu7x:2x2x1
jax: 0.10.0
libtpu: 0.0.40
codegen_flags: <defaults>
</compile_context>

<pallas_src>
import jax
import jax.numpy as jnp
from jax import lax
from jax.experimental import pallas as pl
from jax.experimental.pallas import tpu as pltpu

EPS = 1e-5


def _raysample_kernel(z_ref, w_ref, out_ref):
    # z_ref:   (P, T) coarse z_vals, rays on lanes (sorted along the point axis)
    # w_ref:   (P, T) ray_weights
    # out_ref: (P + S, T) sorted merged lengths
    z = z_ref[...].astype(jnp.float32)                    # (P, T)
    w = w_ref[...].astype(jnp.float32)                    # (P, T)
    P, T = z.shape
    L = out_ref.shape[0]
    S = L - P
    Pm1 = P - 1                                           # number of cdf entries
    K = P - 2                                             # trimmed weights / pdf bins

    # --- uniform variates (det mode), DESCENDING along s ---------------------
    # u[s] = (S-1-s)/(S-1), same value set as torch.linspace(0, 1, S); descending
    # order makes the produced samples descending per ray, so the merge below
    # can treat [z asc | samples desc] as one bitonic slab (no flip needed).
    # TODO(synk): stratified / stratified_test modes would draw u with
    # pltpu.prng_seed + pltpu.prng_random_bits (seed via scalar prefetch).
    step = 1.0 / float(max(S - 1, 1))
    iota_s = lax.broadcasted_iota(jnp.int32, (S, T), 0)
    u = ((S - 1) - iota_s).astype(jnp.float32) * step     # (S, T)

    # --- per-row bins / trimmed pdf (rows kept as (1, T); no slab concat) -----
    bins_rows = [0.5 * (z[j:j + 1, :] + z[j + 1:j + 2, :]) for j in range(Pm1)]
    wt_rows = [w[j:j + 1, :] + EPS for j in range(1, P - 1)]        # K rows
    wsum = wt_rows[0]
    for j in range(1, K):
        wsum = wsum + wt_rows[j]
    inv_wsum = 1.0 / wsum                                 # one divide instead of K
    pdf_rows = [wt_rows[j] * inv_wsum for j in range(K)]

    # --- fused cdf running sum + searchsorted(right) + below/above gathers ----
    # cdf[0]=0, cdf[j]=sum_{i<j} pdf[i];  below = max{j : cdf[j] <= u},
    # above = min(below+1, Pm1-1).  Start at below=0 / above=1 and sweep j up,
    # overwriting the (S, T) accumulators wherever u >= cdf[j].
    cdf_b = jnp.zeros((S, T), jnp.float32)
    bins_b = jnp.broadcast_to(bins_rows[0], (S, T))
    cdf_a = jnp.broadcast_to(pdf_rows[0], (S, T))
    bins_a = jnp.broadcast_to(bins_rows[1], (S, T))
    cdf_run = pdf_rows[0]                                 # cdf[1], (1, T)
    for j in range(1, Pm1):                               # cdf entries 1..K
        cond = u >= cdf_run                               # searchsorted "right"
        cdf_b = jnp.where(cond, cdf_run, cdf_b)
        bins_b = jnp.where(cond, bins_rows[j], bins_b)
        if j < K:
            cdf_nxt = cdf_run + pdf_rows[j]               # cdf[j+1]
            bins_nxt = bins_rows[j + 1]
        else:                                             # top entry: above == K
            cdf_nxt = cdf_run
            bins_nxt = bins_rows[K]
        cdf_a = jnp.where(cond, cdf_nxt, cdf_a)
        bins_a = jnp.where(cond, bins_nxt, bins_a)
        cdf_run = cdf_nxt

    # --- inverse-cdf linear interpolation -------------------------------------
    denom = cdf_a - cdf_b
    denom = jnp.where(denom < EPS, 1.0, denom)
    # TODO(synk): pl.reciprocal(denom, approx=True) would move this divide to
    # the EUP; kept exact to preserve tight parity with the reference.
    t_frac = (u - cdf_b) / denom
    samples = bins_b + t_frac * (bins_a - bins_b)         # (S, T), descending in s

    # --- bitonic merge of the two sorted sequences -----------------------------
    # [z (ascending) | +inf pad | samples (descending)] is bitonic per lane;
    # log2(Lp) compare-exchange stages (stride Lp/2, ..., 1) sort it ascending.
    # Pure slab-level min/max/select; partner rows fetched with explicit
    # slice+concat shifts (unambiguous, register-friendly).
    Lp = 1 << (L - 1).bit_length()                        # next power of two
    parts = [z]
    if Lp > L:
        parts.append(jnp.full((Lp - L, T), jnp.inf, jnp.float32))
    parts.append(samples)
    a = jnp.concatenate(parts, axis=0)                    # (Lp, T)
    row_id = lax.broadcasted_iota(jnp.int32, (Lp, T), 0)
    d = Lp // 2
    while d >= 1:
        up = jnp.concatenate([a[d:, :], a[:d, :]], axis=0)              # up[i]   = a[i+d]
        down = jnp.concatenate([a[Lp - d:, :], a[:Lp - d, :]], axis=0)  # down[i] = a[i-d]
        is_low = (row_id & d) == 0
        a = jnp.where(is_low, jnp.minimum(a, up), jnp.maximum(a, down))
        d //= 2

    out_ref[...] = a[:L, :].astype(out_ref.dtype)         # single lane-dense store


def _round_up(x, m):
    return (x + m - 1) // m * m


def probabilistic_raysampler(lengths, ray_weights, n_pts_per_ray, *, tile_rays=512):
    """Pallas equivalent of ProbabilisticRaysampler.forward (lengths only, det mode).

    Args:
      lengths:       (B, R, P) coarse z_vals, sorted along the last axis
                     (always true for the coarse-pass RayBundle this consumes).
      ray_weights:   (B, R, P) non-negative sampling weights.
      n_pts_per_ray: number of new samples S (det mode: u = linspace(0, 1, S)).
    Returns:
      (B, R, P + S) sorted lengths (add_input_samples=True).
    """
    B, R, P = lengths.shape
    assert P >= 3, "need at least 3 coarse samples per ray"
    S = int(n_pts_per_ray)
    L = P + S
    N = B * R

    # rays on the lane (last) axis
    # TODO(synk): in a hot render loop, keep lengths/ray_weights in (P, N)
    # layout between the coarse and fine passes to drop these transpose passes.
    zT = jnp.transpose(lengths.reshape(N, P))             # (P, N)
    wT = jnp.transpose(ray_weights.reshape(N, P))         # (P, N)

    # pad rays only to the 128-lane boundary (not to a full tile)
    Np = _round_up(N, 128)
    if Np != N:
        zT = jnp.pad(zT, ((0, 0), (0, Np - N)))
        wT = jnp.pad(wT, ((0, 0), (0, Np - N)))

    # lane tile: multiple of 128 dividing Np, preferring >= 2 grid steps
    tile = max(128, min((tile_rays // 128) * 128, Np))
    while Np % tile:
        tile -= 128
    if Np // tile < 2 and Np > 128:
        tile = max(128, ((Np // 2) // 128) * 128)
        while Np % tile:
            tile -= 128

    grid = (Np // tile,)
    # TODO(synk): on v7x, use core-parallel semantics / core_map over the 2-TC
    # mesh on the ray axis; plain "parallel" kept for v5e/v6e portability.
    out = pl.pallas_call(
        _raysample_kernel,
        out_shape=jax.ShapeDtypeStruct((L, Np), jnp.float32),
        grid_spec=pltpu.PrefetchScalarGridSpec(
            num_scalar_prefetch=0,
            grid=grid,
            in_specs=[
                pl.BlockSpec((P, tile), lambda i: (0, i)),
                pl.BlockSpec((P, tile), lambda i: (0, i)),
            ],
            out_specs=pl.BlockSpec((L, tile), lambda i: (0, i)),
        ),
        compiler_params=pltpu.CompilerParams(
            dimension_semantics=("parallel",)),
    )(zT, wT)

    out = out[:, :N]                                      # drop lane padding
    return jnp.transpose(out).reshape(B, R, L).astype(lengths.dtype)


def _reference(lengths, ray_weights, n_pts_per_ray):
    """Pure-JAX reference mirroring the PyTorch sample_pdf + cat + sort (det mode)."""
    B, R, P = lengths.shape
    S = int(n_pts_per_ray)
    z = lengths.reshape(-1, P).astype(jnp.float32)
    w = ray_weights.reshape(-1, P).astype(jnp.float32)
    N = z.shape[0]
    # mirrors torch.linspace(0, 1, S)
    u = jnp.broadcast_to(jnp.arange(S, dtype=jnp.float32) * (1.0 / max(S - 1, 1)), (N, S))

    bins = 0.5 * (z[:, 1:] + z[:, :-1])
    wt = w[:, 1:-1] + EPS
    pdf = wt / jnp.sum(wt, axis=-1, keepdims=True)
    cdf = jnp.cumsum(pdf, axis=-1)
    cdf = jnp.concatenate([jnp.zeros_like(cdf[:, :1]), cdf], axis=-1)

    inds = jax.vmap(lambda c, v: jnp.searchsorted(c, v, side="right"))(cdf, u)
    below = jnp.clip(inds - 1, 0, cdf.shape[-1] - 1)
    above = jnp.clip(inds, 0, cdf.shape[-1] - 1)
    cdf_b = jnp.take_along_axis(cdf, below, axis=-1)
    cdf_a = jnp.take_along_axis(cdf, above, axis=-1)
    bins_b = jnp.take_along_axis(bins, below, axis=-1)
    bins_a = jnp.take_along_axis(bins, above, axis=-1)
    denom = cdf_a - cdf_b
    denom = jnp.where(denom < EPS, jnp.ones_like(denom), denom)
    t = (u - cdf_b) / denom
    samples = bins_b + t * (bins_a - bins_b)

    z_all = jnp.concatenate([z, samples], axis=-1)
    return jnp.sort(z_all, axis=-1).reshape(B, R, P + S)


if __name__ == "__main__":
    # Module config: n_pts_per_ray=8, stratified=False, stratified_test=False,
    # add_input_samples=True, eval mode  ->  det=True  ->  u = linspace(0, 1, S).
    B, R, P, S = 2, 512, 8, 8
    key = jax.random.PRNGKey(0)
    k1, k2 = jax.random.split(key)

    base = jnp.linspace(0.1, 4.0, P)
    z_vals = base[None, None, :] + 0.01 * jax.random.uniform(k1, (B, R, P))
    z_vals = jnp.sort(z_vals, axis=-1)                        # coarse lengths, increasing
    ray_weights = 0.1 + 0.9 * jax.random.uniform(k2, (B, R, P))  # positive weights

    out = probabilistic_raysampler(z_vals, ray_weights, S)
    out = jax.block_until_ready(out)

    ref = _reference(z_vals, ray_weights, S)
    assert out.shape == (B, R, P + S), out.shape
    assert bool(jnp.allclose(out, ref, atol=1e-4)), "mismatch vs reference"

    # TODO(synk): origins/directions/xys of the RayBundle are pure passthrough
    # (no compute) and are omitted from the kernel.
    print("KERNEL_OK")
</pallas_src>

<mosaic_0001>
module attributes {stable_mosaic.version = 11 : i64} {
  func.func @_raysample_kernel(%arg0: i32, %arg1: memref<8x512xf32, #tpu.memory_space<vmem>>, %arg2: memref<8x512xf32, #tpu.memory_space<vmem>>, %arg3: memref<16x512xf32, #tpu.memory_space<vmem>>) attributes {dimension_semantics = [#tpu.dimension_semantics<parallel>], iteration_bounds = array<i64: 2>, scalar_prefetch = 0 : i64, scratch_operands = 0 : i64, tpu.core_type = #tpu.core_type<tc>, window_params = [{transform_indices = @transform_0, window_bounds = array<i64: 8, 512>}, {transform_indices = @transform_1, window_bounds = array<i64: 8, 512>}, {transform_indices = @transform_2, window_bounds = array<i64: 16, 512>}]} {
    %c0 = arith.constant 0 : index
    %c0_0 = arith.constant 0 : index
    %0 = vector.load %arg1[%c0, %c0_0] : memref<8x512xf32, #tpu.memory_space<vmem>>, vector<8x512xf32>
    %c0_1 = arith.constant 0 : index
    %c0_2 = arith.constant 0 : index
    %1 = vector.load %arg2[%c0_1, %c0_2] : memref<8x512xf32, #tpu.memory_space<vmem>>, vector<8x512xf32>
    %2 = tpu.iota {dimensions = array<i32: 0>} : vector<8x512xi32>
    %c7_i32 = arith.constant 7 : i32
    %3 = vector.broadcast %c7_i32 : i32 to vector<8x512xi32>
    %4 = arith.subi %3, %2 : vector<8x512xi32>
    %5 = arith.sitofp %4 : vector<8x512xi32> to vector<8x512xf32>
    %cst = arith.constant 0.142857149 : f32
    %6 = vector.broadcast %cst : f32 to vector<8x512xf32>
    %7 = arith.mulf %5, %6 : vector<8x512xf32>
    %8 = vector.extract_strided_slice %0 {offsets = [0, 0], sizes = [1, 512], strides = [1, 1]} : vector<8x512xf32> to vector<1x512xf32>
    %9 = vector.extract_strided_slice %0 {offsets = [1, 0], sizes = [1, 512], strides = [1, 1]} : vector<8x512xf32> to vector<1x512xf32>
    %10 = arith.addf %8, %9 : vector<1x512xf32>
    %cst_3 = arith.constant 5.000000e-01 : f32
    %11 = vector.broadcast %cst_3 : f32 to vector<1x512xf32>
    %12 = arith.mulf %11, %10 : vector<1x512xf32>
    %13 = vector.extract_strided_slice %0 {offsets = [1, 0], sizes = [1, 512], strides = [1, 1]} : vector<8x512xf32> to vector<1x512xf32>
    %14 = vector.extract_strided_slice %0 {offsets = [2, 0], sizes = [1, 512], strides = [1, 1]} : vector<8x512xf32> to vector<1x512xf32>
    %15 = arith.addf %13, %14 : vector<1x512xf32>
    %cst_4 = arith.constant 5.000000e-01 : f32
    %16 = vector.broadcast %cst_4 : f32 to vector<1x512xf32>
    %17 = arith.mulf %16, %15 : vector<1x512xf32>
    %18 = vector.extract_strided_slice %0 {offsets = [2, 0], sizes = [1, 512], strides = [1, 1]} : vector<8x512xf32> to vector<1x512xf32>
    %19 = vector.extract_strided_slice %0 {offsets = [3, 0], sizes = [1, 512], strides = [1, 1]} : vector<8x512xf32> to vector<1x512xf32>
    %20 = arith.addf %18, %19 : vector<1x512xf32>
    %cst_5 = arith.constant 5.000000e-01 : f32
    %21 = vector.broadcast %cst_5 : f32 to vector<1x512xf32>
    %22 = arith.mulf %21, %20 : vector<1x512xf32>
    %23 = vector.extract_strided_slice %0 {offsets = [3, 0], sizes = [1, 512], strides = [1, 1]} : vector<8x512xf32> to vector<1x512xf32>
    %24 = vector.extract_strided_slice %0 {offsets = [4, 0], sizes = [1, 512], strides = [1, 1]} : vector<8x512xf32> to vector<1x512xf32>
    %25 = arith.addf %23, %24 : vector<1x512xf32>
    %cst_6 = arith.constant 5.000000e-01 : f32
    %26 = vector.broadcast %cst_6 : f32 to vector<1x512xf32>
    %27 = arith.mulf %26, %25 : vector<1x512xf32>
    %28 = vector.extract_strided_slice %0 {offsets = [4, 0], sizes = [1, 512], strides = [1, 1]} : vector<8x512xf32> to vector<1x512xf32>
    %29 = vector.extract_strided_slice %0 {offsets = [5, 0], sizes = [1, 512], strides = [1, 1]} : vector<8x512xf32> to vector<1x512xf32>
    %30 = arith.addf %28, %29 : vector<1x512xf32>
    %cst_7 = arith.constant 5.000000e-01 : f32
    %31 = vector.broadcast %cst_7 : f32 to vector<1x512xf32>
    %32 = arith.mulf %31, %30 : vector<1x512xf32>
    %33 = vector.extract_strided_slice %0 {offsets = [5, 0], sizes = [1, 512], strides = [1, 1]} : vector<8x512xf32> to vector<1x512xf32>
    %34 = vector.extract_strided_slice %0 {offsets = [6, 0], sizes = [1, 512], strides = [1, 1]} : vector<8x512xf32> to vector<1x512xf32>
    %35 = arith.addf %33, %34 : vector<1x512xf32>
    %cst_8 = arith.constant 5.000000e-01 : f32
    %36 = vector.broadcast %cst_8 : f32 to vector<1x512xf32>
    %37 = arith.mulf %36, %35 : vector<1x512xf32>
    %38 = vector.extract_strided_slice %0 {offsets = [6, 0], sizes = [1, 512], strides = [1, 1]} : vector<8x512xf32> to vector<1x512xf32>
    %39 = vector.extract_strided_slice %0 {offsets = [7, 0], sizes = [1, 512], strides = [1, 1]} : vector<8x512xf32> to vector<1x512xf32>
    %40 = arith.addf %38, %39 : vector<1x512xf32>
    %cst_9 = arith.constant 5.000000e-01 : f32
    %41 = vector.broadcast %cst_9 : f32 to vector<1x512xf32>
    %42 = arith.mulf %41, %40 : vector<1x512xf32>
    %43 = vector.extract_strided_slice %1 {offsets = [1, 0], sizes = [1, 512], strides = [1, 1]} : vector<8x512xf32> to vector<1x512xf32>
    %cst_10 = arith.constant 9.99999974E-6 : f32
    %44 = vector.broadcast %cst_10 : f32 to vector<1x512xf32>
    %45 = arith.addf %43, %44 : vector<1x512xf32>
    %46 = vector.extract_strided_slice %1 {offsets = [2, 0], sizes = [1, 512], strides = [1, 1]} : vector<8x512xf32> to vector<1x512xf32>
    %cst_11 = arith.constant 9.99999974E-6 : f32
    %47 = vector.broadcast %cst_11 : f32 to vector<1x512xf32>
    %48 = arith.addf %46, %47 : vector<1x512xf32>
    %49 = vector.extract_strided_slice %1 {offsets = [3, 0], sizes = [1, 512], strides = [1, 1]} : vector<8x512xf32> to vector<1x512xf32>
    %cst_12 = arith.constant 9.99999974E-6 : f32
    %50 = vector.broadcast %cst_12 : f32 to vector<1x512xf32>
    %51 = arith.addf %49, %50 : vector<1x512xf32>
    %52 = vector.extract_strided_slice %1 {offsets = [4, 0], sizes = [1, 512], strides = [1, 1]} : vector<8x512xf32> to vector<1x512xf32>
    %cst_13 = arith.constant 9.99999974E-6 : f32
    %53 = vector.broadcast %cst_13 : f32 to vector<1x512xf32>
    %54 = arith.addf %52, %53 : vector<1x512xf32>
    %55 = vector.extract_strided_slice %1 {offsets = [5, 0], sizes = [1, 512], strides = [1, 1]} : vector<8x512xf32> to vector<1x512xf32>
    %cst_14 = arith.constant 9.99999974E-6 : f32
    %56 = vector.broadcast %cst_14 : f32 to vector<1x512xf32>
    %57 = arith.addf %55, %56 : vector<1x512xf32>
    %58 = vector.extract_strided_slice %1 {offsets = [6, 0], sizes = [1, 512], strides = [1, 1]} : vector<8x512xf32> to vector<1x512xf32>
    %cst_15 = arith.constant 9.99999974E-6 : f32
    %59 = vector.broadcast %cst_15 : f32 to vector<1x512xf32>
    %60 = arith.addf %58, %59 : vector<1x512xf32>
    %61 = arith.addf %45, %48 : vector<1x512xf32>
    %62 = arith.addf %61, %51 : vector<1x512xf32>
    %63 = arith.addf %62, %54 : vector<1x512xf32>
    %64 = arith.addf %63, %57 : vector<1x512xf32>
    %65 = arith.addf %64, %60 : vector<1x512xf32>
    %cst_16 = arith.constant 1.000000e+00 : f32
    %66 = vector.broadcast %cst_16 : f32 to vector<1x512xf32>
    %67 = arith.divf %66, %65 : vector<1x512xf32>
    %68 = arith.mulf %45, %67 : vector<1x512xf32>
    %69 = arith.mulf %48, %67 : vector<1x512xf32>
    %70 = arith.mulf %51, %67 : vector<1x512xf32>
    %71 = arith.mulf %54, %67 : vector<1x512xf32>
    %72 = arith.mulf %57, %67 : vector<1x512xf32>
    %73 = arith.mulf %60, %67 : vector<1x512xf32>
    %cst_17 = arith.constant 0.000000e+00 : f32
    %74 = vector.broadcast %cst_17 : f32 to vector<8x512xf32>
    %75 = vector.shape_cast %12 : vector<1x512xf32> to vector<1x512xf32>
    %76 = vector.broadcast %75 : vector<1x512xf32> to vector<8x512xf32>
    %77 = vector.shape_cast %68 : vector<1x512xf32> to vector<1x512xf32>
    %78 = vector.broadcast %77 : vector<1x512xf32> to vector<8x512xf32>
    %79 = vector.shape_cast %17 : vector<1x512xf32> to vector<1x512xf32>
    %80 = vector.broadcast %79 : vector<1x512xf32> to vector<8x512xf32>
    %81 = vector.broadcast %68 : vector<1x512xf32> to vector<8x512xf32>
    %82 = arith.cmpf oge, %7, %81 : vector<8x512xf32>
    %83 = vector.shape_cast %68 : vector<1x512xf32> to vector<1x512xf32>
    %84 = vector.broadcast %83 : vector<1x512xf32> to vector<8x512xf32>
    %85 = arith.select %82, %84, %74 : vector<8x512xi1>, vector<8x512xf32>
    %86 = vector.shape_cast %17 : vector<1x512xf32> to vector<1x512xf32>
    %87 = vector.broadcast %86 : vector<1x512xf32> to vector<8x512xf32>
    %88 = arith.select %82, %87, %76 : vector<8x512xi1>, vector<8x512xf32>
    %89 = arith.addf %68, %69 : vector<1x512xf32>
    %90 = vector.shape_cast %89 : vector<1x512xf32> to vector<1x512xf32>
    %91 = vector.broadcast %90 : vector<1x512xf32> to vector<8x512xf32>
    %92 = arith.select %82, %91, %78 : vector<8x512xi1>, vector<8x512xf32>
    %93 = vector.shape_cast %22 : vector<1x512xf32> to vector<1x512xf32>
    %94 = vector.broadcast %93 : vector<1x512xf32> to vector<8x512xf32>
    %95 = arith.select %82, %94, %80 : vector<8x512xi1>, vector<8x512xf32>
    %96 = vector.broadcast %89 : vector<1x512xf32> to vector<8x512xf32>
    %97 = arith.cmpf oge, %7, %96 : vector<8x512xf32>
    %98 = vector.shape_cast %89 : vector<1x512xf32> to vector<1x512xf32>
    %99 = vector.broadcast %98 : vector<1x512xf32> to vector<8x512xf32>
    %100 = arith.select %97, %99, %85 : vector<8x512xi1>, vector<8x512xf32>
    %101 = vector.shape_cast %22 : vector<1x512xf32> to vector<1x512xf32>
    %102 = vector.broadcast %101 : vector<1x512xf32> to vector<8x512xf32>
    %103 = arith.select %97, %102, %88 : vector<8x512xi1>, vector<8x512xf32>
    %104 = arith.addf %89, %70 : vector<1x512xf32>
    %105 = vector.shape_cast %104 : vector<1x512xf32> to vector<1x512xf32>
    %106 = vector.broadcast %105 : vector<1x512xf32> to vector<8x512xf32>
    %107 = arith.select %97, %106, %92 : vector<8x512xi1>, vector<8x512xf32>
    %108 = vector.shape_cast %27 : vector<1x512xf32> to vector<1x512xf32>
    %109 = vector.broadcast %108 : vector<1x512xf32> to vector<8x512xf32>
    %110 = arith.select %97, %109, %95 : vector<8x512xi1>, vector<8x512xf32>
    %111 = vector.broadcast %104 : vector<1x512xf32> to vector<8x512xf32>
    %112 = arith.cmpf oge, %7, %111 : vector<8x512xf32>
    %113 = vector.shape_cast %104 : vector<1x512xf32> to vector<1x512xf32>
    %114 = vector.broadcast %113 : vector<1x512xf32> to vector<8x512xf32>
    %115 = arith.select %112, %114, %100 : vector<8x512xi1>, vector<8x512xf32>
    %116 = vector.shape_cast %27 : vector<1x512xf32> to vector<1x512xf32>
    %117 = vector.broadcast %116 : vector<1x512xf32> to vector<8x512xf32>
    %118 = arith.select %112, %117, %103 : vector<8x512xi1>, vector<8x512xf32>
    %119 = arith.addf %104, %71 : vector<1x512xf32>
    %120 = vector.shape_cast %119 : vector<1x512xf32> to vector<1x512xf32>
    %121 = vector.broadcast %120 : vector<1x512xf32> to vector<8x512xf32>
    %122 = arith.select %112, %121, %107 : vector<8x512xi1>, vector<8x512xf32>
    %123 = vector.shape_cast %32 : vector<1x512xf32> to vector<1x512xf32>
    %124 = vector.broadcast %123 : vector<1x512xf32> to vector<8x512xf32>
    %125 = arith.select %112, %124, %110 : vector<8x512xi1>, vector<8x512xf32>
    %126 = vector.broadcast %119 : vector<1x512xf32> to vector<8x512xf32>
    %127 = arith.cmpf oge, %7, %126 : vector<8x512xf32>
    %128 = vector.shape_cast %119 : vector<1x512xf32> to vector<1x512xf32>
    %129 = vector.broadcast %128 : vector<1x512xf32> to vector<8x512xf32>
    %130 = arith.select %127, %129, %115 : vector<8x512xi1>, vector<8x512xf32>
    %131 = vector.shape_cast %32 : vector<1x512xf32> to vector<1x512xf32>
    %132 = vector.broadcast %131 : vector<1x512xf32> to vector<8x512xf32>
    %133 = arith.select %127, %132, %118 : vector<8x512xi1>, vector<8x512xf32>
    %134 = arith.addf %119, %72 : vector<1x512xf32>
    %135 = vector.shape_cast %134 : vector<1x512xf32> to vector<1x512xf32>
    %136 = vector.broadcast %135 : vector<1x512xf32> to vector<8x512xf32>
    %137 = arith.select %127, %136, %122 : vector<8x512xi1>, vector<8x512xf32>
    %138 = vector.shape_cast %37 : vector<1x512xf32> to vector<1x512xf32>
    %139 = vector.broadcast %138 : vector<1x512xf32> to vector<8x512xf32>
    %140 = arith.select %127, %139, %125 : vector<8x512xi1>, vector<8x512xf32>
    %141 = vector.broadcast %134 : vector<1x512xf32> to vector<8x512xf32>
    %142 = arith.cmpf oge, %7, %141 : vector<8x512xf32>
    %143 = vector.shape_cast %134 : vector<1x512xf32> to vector<1x512xf32>
    %144 = vector.broadcast %143 : vector<1x512xf32> to vector<8x512xf32>
    %145 = arith.select %142, %144, %130 : vector<8x512xi1>, vector<8x512xf32>
    %146 = vector.shape_cast %37 : vector<1x512xf32> to vector<1x512xf32>
    %147 = vector.broadcast %146 : vector<1x512xf32> to vector<8x512xf32>
    %148 = arith.select %142, %147, %133 : vector<8x512xi1>, vector<8x512xf32>
    %149 = arith.addf %134, %73 : vector<1x512xf32>
    %150 = vector.shape_cast %149 : vector<1x512xf32> to vector<1x512xf32>
    %151 = vector.broadcast %150 : vector<1x512xf32> to vector<8x512xf32>
    %152 = arith.select %142, %151, %137 : vector<8x512xi1>, vector<8x512xf32>
    %153 = vector.shape_cast %42 : vector<1x512xf32> to vector<1x512xf32>
    %154 = vector.broadcast %153 : vector<1x512xf32> to vector<8x512xf32>
    %155 = arith.select %142, %154, %140 : vector<8x512xi1>, vector<8x512xf32>
    %156 = vector.broadcast %149 : vector<1x512xf32> to vector<8x512xf32>
    %157 = arith.cmpf oge, %7, %156 : vector<8x512xf32>
    %158 = vector.shape_cast %149 : vector<1x512xf32> to vector<1x512xf32>
    %159 = vector.broadcast %158 : vector<1x512xf32> to vector<8x512xf32>
    %160 = arith.select %157, %159, %145 : vector<8x512xi1>, vector<8x512xf32>
    %161 = vector.shape_cast %42 : vector<1x512xf32> to vector<1x512xf32>
    %162 = vector.broadcast %161 : vector<1x512xf32> to vector<8x512xf32>
    %163 = arith.select %157, %162, %148 : vector<8x512xi1>, vector<8x512xf32>
    %164 = vector.shape_cast %149 : vector<1x512xf32> to vector<1x512xf32>
    %165 = vector.broadcast %164 : vector<1x512xf32> to vector<8x512xf32>
    %166 = arith.select %157, %165, %152 : vector<8x512xi1>, vector<8x512xf32>
    %167 = vector.shape_cast %42 : vector<1x512xf32> to vector<1x512xf32>
    %168 = vector.broadcast %167 : vector<1x512xf32> to vector<8x512xf32>
    %169 = arith.select %157, %168, %155 : vector<8x512xi1>, vector<8x512xf32>
    %170 = arith.subf %166, %160 : vector<8x512xf32>
    %cst_18 = arith.constant 9.99999974E-6 : f32
    %171 = vector.broadcast %cst_18 : f32 to vector<8x512xf32>
    %172 = arith.cmpf olt, %170, %171 : vector<8x512xf32>
    %cst_19 = arith.constant 1.000000e+00 : f32
    %173 = vector.broadcast %cst_19 : f32 to vector<8x512xf32>
    %174 = arith.select %172, %173, %170 : vector<8x512xi1>, vector<8x512xf32>
    %175 = arith.subf %7, %160 : vector<8x512xf32>
    %176 = arith.divf %175, %174 : vector<8x512xf32>
    %177 = arith.subf %169, %163 : vector<8x512xf32>
    %178 = arith.mulf %176, %177 : vector<8x512xf32>
    %179 = arith.addf %163, %178 : vector<8x512xf32>
    %180 = tpu.concatenate %0, %179 in 0 : vector<8x512xf32>, vector<8x512xf32> -> vector<16x512xf32>
    %181 = tpu.iota {dimensions = array<i32: 0>} : vector<16x512xi32>
    %182 = vector.extract_strided_slice %180 {offsets = [8, 0], sizes = [8, 512], strides = [1, 1]} : vector<16x512xf32> to vector<8x512xf32>
    %183 = vector.extract_strided_slice %180 {offsets = [0, 0], sizes = [8, 512], strides = [1, 1]} : vector<16x512xf32> to vector<8x512xf32>
    %184 = tpu.concatenate %182, %183 in 0 : vector<8x512xf32>, vector<8x512xf32> -> vector<16x512xf32>
    %185 = vector.extract_strided_slice %180 {offsets = [8, 0], sizes = [8, 512], strides = [1, 1]} : vector<16x512xf32> to vector<8x512xf32>
    %186 = vector.extract_strided_slice %180 {offsets = [0, 0], sizes = [8, 512], strides = [1, 1]} : vector<16x512xf32> to vector<8x512xf32>
    %187 = tpu.concatenate %185, %186 in 0 : vector<8x512xf32>, vector<8x512xf32> -> vector<16x512xf32>
    %c8_i32 = arith.constant 8 : i32
    %188 = vector.broadcast %c8_i32 : i32 to vector<16x512xi32>
    %189 = arith.andi %181, %188 : vector<16x512xi32>
    %c0_i32 = arith.constant 0 : i32
    %190 = vector.broadcast %c0_i32 : i32 to vector<16x512xi32>
    %191 = arith.cmpi eq, %189, %190 : vector<16x512xi32>
    %192 = arith.minimumf %180, %184 : vector<16x512xf32>
    %193 = arith.maximumf %180, %187 : vector<16x512xf32>
    %194 = arith.select %191, %192, %193 : vector<16x512xi1>, vector<16x512xf32>
    %195 = vector.extract_strided_slice %194 {offsets = [4, 0], sizes = [12, 512], strides = [1, 1]} : vector<16x512xf32> to vector<12x512xf32>
    %196 = vector.extract_strided_slice %194 {offsets = [0, 0], sizes = [4, 512], strides = [1, 1]} : vector<16x512xf32> to vector<4x512xf32>
    %197 = tpu.concatenate %195, %196 in 0 : vector<12x512xf32>, vector<4x512xf32> -> vector<16x512xf32>
    %198 = vector.extract_strided_slice %194 {offsets = [12, 0], sizes = [4, 512], strides = [1, 1]} : vector<16x512xf32> to vector<4x512xf32>
    %199 = vector.extract_strided_slice %194 {offsets = [0, 0], sizes = [12, 512], strides = [1, 1]} : vector<16x512xf32> to vector<12x512xf32>
    %200 = tpu.concatenate %198, %199 in 0 : vector<4x512xf32>, vector<12x512xf32> -> vector<16x512xf32>
    %c4_i32 = arith.constant 4 : i32
    %201 = vector.broadcast %c4_i32 : i32 to vector<16x512xi32>
    %202 = arith.andi %181, %201 : vector<16x512xi32>
    %c0_i32_20 = arith.constant 0 : i32
    %203 = vector.broadcast %c0_i32_20 : i32 to vector<16x512xi32>
    %204 = arith.cmpi eq, %202, %203 : vector<16x512xi32>
    %205 = arith.minimumf %194, %197 : vector<16x512xf32>
    %206 = arith.maximumf %194, %200 : vector<16x512xf32>
    %207 = arith.select %204, %205, %206 : vector<16x512xi1>, vector<16x512xf32>
    %208 = vector.extract_strided_slice %207 {offsets = [2, 0], sizes = [14, 512], strides = [1, 1]} : vector<16x512xf32> to vector<14x512xf32>
    %209 = vector.extract_strided_slice %207 {offsets = [0, 0], sizes = [2, 512], strides = [1, 1]} : vector<16x512xf32> to vector<2x512xf32>
    %210 = tpu.concatenate %208, %209 in 0 : vector<14x512xf32>, vector<2x512xf32> -> vector<16x512xf32>
    %211 = vector.extract_strided_slice %207 {offsets = [14, 0], sizes = [2, 512], strides = [1, 1]} : vector<16x512xf32> to vector<2x512xf32>
    %212 = vector.extract_strided_slice %207 {offsets = [0, 0], sizes = [14, 512], strides = [1, 1]} : vector<16x512xf32> to vector<14x512xf32>
    %213 = tpu.concatenate %211, %212 in 0 : vector<2x512xf32>, vector<14x512xf32> -> vector<16x512xf32>
    %c2_i32 = arith.constant 2 : i32
    %214 = vector.broadcast %c2_i32 : i32 to vector<16x512xi32>
    %215 = arith.andi %181, %214 : vector<16x512xi32>
    %c0_i32_21 = arith.constant 0 : i32
    %216 = vector.broadcast %c0_i32_21 : i32 to vector<16x512xi32>
    %217 = arith.cmpi eq, %215, %216 : vector<16x512xi32>
    %218 = arith.minimumf %207, %210 : vector<16x512xf32>
    %219 = arith.maximumf %207, %213 : vector<16x512xf32>
    %220 = arith.select %217, %218, %219 : vector<16x512xi1>, vector<16x512xf32>
    %221 = vector.extract_strided_slice %220 {offsets = [1, 0], sizes = [15, 512], strides = [1, 1]} : vector<16x512xf32> to vector<15x512xf32>
    %222 = vector.extract_strided_slice %220 {offsets = [0, 0], sizes = [1, 512], strides = [1, 1]} : vector<16x512xf32> to vector<1x512xf32>
    %223 = tpu.concatenate %221, %222 in 0 : vector<15x512xf32>, vector<1x512xf32> -> vector<16x512xf32>
    %224 = vector.extract_strided_slice %220 {offsets = [15, 0], sizes = [1, 512], strides = [1, 1]} : vector<16x512xf32> to vector<1x512xf32>
    %225 = vector.extract_strided_slice %220 {offsets = [0, 0], sizes = [15, 512], strides = [1, 1]} : vector<16x512xf32> to vector<15x512xf32>
    %226 = tpu.concatenate %224, %225 in 0 : vector<1x512xf32>, vector<15x512xf32> -> vector<16x512xf32>
    %c1_i32 = arith.constant 1 : i32
    %227 = vector.broadcast %c1_i32 : i32 to vector<16x512xi32>
    %228 = arith.andi %181, %227 : vector<16x512xi32>
    %c0_i32_22 = arith.constant 0 : i32
    %229 = vector.broadcast %c0_i32_22 : i32 to vector<16x512xi32>
    %230 = arith.cmpi eq, %228, %229 : vector<16x512xi32>
    %231 = arith.minimumf %220, %223 : vector<16x512xf32>
    %232 = arith.maximumf %220, %226 : vector<16x512xf32>
    %233 = arith.select %230, %231, %232 : vector<16x512xi1>, vector<16x512xf32>
    %c0_23 = arith.constant 0 : index
    %c0_24 = arith.constant 0 : index
    %234 = vector.load %arg3[%c0_23, %c0_24] : memref<16x512xf32, #tpu.memory_space<vmem>>, vector<16x512xf32>
    tpu.vector_store %arg3[%c0_23, %c0_24], %233 {strides = array<i32>} : memref<16x512xf32, #tpu.memory_space<vmem>>, vector<16x512xf32>,
    return
  }
  func.func @transform_0(%arg0: i32) -> (i32, i32) {
    %c0_i32 = arith.constant 0 : i32
    %c0_i32_0 = arith.constant 0 : i32
    return %c0_i32, %arg0 : i32, i32
  }
  func.func @transform_1(%arg0: i32) -> (i32, i32) {
    %c0_i32 = arith.constant 0 : i32
    %c0_i32_0 = arith.constant 0 : i32
    return %c0_i32, %arg0 : i32, i32
  }
  func.func @transform_2(%arg0: i32) -> (i32, i32) {
    %c0_i32 = arith.constant 0 : i32
    %c0_i32_0 = arith.constant 0 : i32
    return %c0_i32, %arg0 : i32, i32
  }
}

</mosaic_0001>

<llo_original>
// kernel: tpu_custom_call.1
$region0: #{tpu_custom_call.1}
  #allocation0 [shape = 'u32[]', space=smem, size = 0x4, offset = 0x4, fixed_abs, tag = 'smem constant byte address 0x4 - core index']
  #allocation1 [shape = 'u32[144,128]{1,0:T(1,128)}', space=vmem, size = 0x12000, scoped, tag = 'internal scratch']
  %s0 = inlined_call_operand.hbm [shape: f32[8,1024], index: 0, kind: input, shape index: {}]
  %s1 = inlined_call_operand.hbm [shape: f32[8,1024], index: 1, kind: input, shape index: {}]
  %s2 = inlined_call_operand.hbm [shape: f32[16,1024], index: 2, kind: output, shape index: {}]
  %s3 = sld [smem:[#allocation0]]
  $region49: #{tpu_custom_call.1} parent=0
    _
  %s5 = ssub.s32 1, %s3
  %s6 = scalar_select 0, %s5, %s3
  $region1: #{tpu_custom_call.1} parent=0
    #allocation2 [shape = 'u8[32768]{0}', space=vmem, size = 0x8000, scoped, tag = 'input window, operand 0']
    #allocation3 [shape = 's32[2]{0}', space=sflag, size = 0x8, scoped, tag = 'scoped memory for tpu_custom_call.1']
    #allocation4 [shape = 's32[2]{0}', space=sflag, size = 0x8, scoped, tag = 'scoped memory for tpu_custom_call.1']
    #allocation5 [shape = 'u8[32768]{0}', space=vmem, size = 0x8000, scoped, tag = 'input window, operand 1']
    #allocation6 [shape = 's32[2]{0}', space=sflag, size = 0x8, scoped, tag = 'scoped memory for tpu_custom_call.1']
    #allocation7 [shape = 'u8[65536]{0}', space=vmem, size = 0x10000, scoped, tag = 'output window, operand 0']
    %7 = vsyncpa [#allocation3], 0
    %s8 = scalar_lea.sflag [#allocation3], 1
    %9 = vsyncpa %s8, 0
    %10 = vsyncpa [#allocation6], 0
    %s11 = scalar_lea.sflag [#allocation6], 1
    %12 = vsyncpa %s11, 0
    %13 = vsyncpa [#allocation4], 0
    %s14 = scalar_lea.sflag [#allocation4], 1
    %15 = vsyncpa %s14, 0
    loop: start=0, step=1, limit=4
    $region2: #{tpu_custom_call.1} parent=1 // loop_pre_header
      _
    $region3: #{tpu_custom_call.1} parent=1 // loop_header
      %s17 = sphi 0, %s21
      %p18 = scmp.ge.s32.totalorder %s17, 4
      %s27 = sphi 0, %s29
      %s30 = sphi 0, %s27
      %s31 = sphi 0, %s30
      %s47 = sphi 0, %s31
      %s53 = sphi 0, %s55
      %s56 = sphi 0, %s53
      %s57 = sphi 0, %s56
      %s73 = sphi 0, %s57
      %s79 = sphi 0, %s81
      %s82 = sphi 0, %s79
      %s83 = sphi 0, %s82
      %s99 = sphi 0, %s83
    $region4: #{tpu_custom_call.1} parent=1 // loop_header_branch
      %20 = sbr.rel (%p18) target = $region8
    $region5: #{tpu_custom_call.1} parent=1 // loop_body
      %s22 = ssub.s32 %s17, 1
      %s23 = ssub.s32 %s17, 2
      %s24 = sadd.s32 %s17, 1
      %s25 = ssub.s32 %s17, %s24
      %p26 = scmp.eq.s32.totalorder %s25, 0
      %s28 = sadd.s32 %s27, 1
      %s29 = scalar_select %p26, %s27, %s28
      %p32 = pneg %p26
      %p33 = scmp.eq.s32.totalorder %s17, 1
      %p34 = por %p32, %p33
      %p35 = scmp.ne.s32.totalorder %s27, %s30
      %p36 = scmp.eq.s32.totalorder %s17, 0
      %p37 = por %p35, %p36
      %p38 = scmp.ne.s32.totalorder %s27, %s30
      %p39 = scmp.eq.s32.totalorder %s22, 1
      %p40 = por %p38, %p39
      %p41 = scmp.ne.s32.totalorder %s30, %s31
      %p42 = scmp.eq.s32.totalorder %s22, 0
      %p43 = por %p41, %p42
      %p44 = scmp.ne.s32.totalorder %s30, %s31
      %p45 = scmp.eq.s32.totalorder %s23, 1
      %p46 = por %p44, %p45
      %p48 = scmp.ne.s32.totalorder %s31, %s47
      %p49 = scmp.eq.s32.totalorder %s23, 0
      %p50 = por %p48, %p49
      %s51 = ssub.s32 %s17, %s24
      %p52 = scmp.eq.s32.totalorder %s51, 0
      %s54 = sadd.s32 %s53, 1
      %s55 = scalar_select %p52, %s53, %s54
      %p58 = pneg %p52
      %p59 = scmp.eq.s32.totalorder %s17, 1
      %p60 = por %p58, %p59
      %p61 = scmp.ne.s32.totalorder %s53, %s56
      %p62 = scmp.eq.s32.totalorder %s17, 0
      %p63 = por %p61, %p62
      %p64 = scmp.ne.s32.totalorder %s53, %s56
      %p65 = scmp.eq.s32.totalorder %s22, 1
      %p66 = por %p64, %p65
      %p67 = scmp.ne.s32.totalorder %s56, %s57
      %p68 = scmp.eq.s32.totalorder %s22, 0
      %p69 = por %p67, %p68
      %p70 = scmp.ne.s32.totalorder %s56, %s57
      %p71 = scmp.eq.s32.totalorder %s23, 1
      %p72 = por %p70, %p71
      %p74 = scmp.ne.s32.totalorder %s57, %s73
      %p75 = scmp.eq.s32.totalorder %s23, 0
      %p76 = por %p74, %p75
      %s77 = ssub.s32 %s17, %s24
      %p78 = scmp.eq.s32.totalorder %s77, 0
      %s80 = sadd.s32 %s79, 1
      %s81 = scalar_select %p78, %s79, %s80
      %p84 = pneg %p78
      %p85 = scmp.eq.s32.totalorder %s17, 1
      %p86 = por %p84, %p85
      %p87 = scmp.ne.s32.totalorder %s79, %s82
      %p88 = scmp.eq.s32.totalorder %s17, 0
      %p89 = por %p87, %p88
      %p90 = scmp.ne.s32.totalorder %s79, %s82
      %p91 = scmp.eq.s32.totalorder %s22, 1
      %p92 = por %p90, %p91
      %p93 = scmp.ne.s32.totalorder %s82, %s83
      %p94 = scmp.eq.s32.totalorder %s22, 0
      %p95 = por %p93, %p94
      %p96 = scmp.ne.s32.totalorder %s82, %s83
      %p97 = scmp.eq.s32.totalorder %s23, 1
      %p98 = por %p96, %p97
      %p100 = scmp.ne.s32.totalorder %s83, %s99
      %p101 = scmp.eq.s32.totalorder %s23, 0
      %p102 = por %p100, %p101
      %p103 = scmp.le.s32.totalorder 1, %s17
      %p104 = scmp.lt.s32.totalorder %s17, 3
      %p105 = pnand %p103, %p104
      %p106 = pneg %p105
      // Predicated region
      $region9: #{tpu_custom_call.1} parent=5 // pred_check
        _
      $region10: #{tpu_custom_call.1} parent=5 // pred_check_branch
        %108 = sbr.rel (%p105) target = $region12
      $region11: #{tpu_custom_call.1} parent=5 // pred_region
        %s109 = ssub.s32 %s17, 1
      $region12: #{tpu_custom_call.1} parent=5 // pred_fallthru
        _
      %p110 = scmp.lt.s32.totalorder %s17, 2
      // Predicated region
      $region13: #{tpu_custom_call.1} parent=5 // pred_check
        %p111 = pneg %p110
      $region14: #{tpu_custom_call.1} parent=5 // pred_check_branch
        %113 = sbr.rel (%p111) target = $region16
      $region15: #{tpu_custom_call.1} parent=5 // pred_region
        // Predicated region
        $region17: #{tpu_custom_call.1} parent=15 // pred_check
          %p114 = pneg %p37
        $region18: #{tpu_custom_call.1} parent=15 // pred_check_branch
          %116 = sbr.rel (%p114) target = $region20
        $region19: #{tpu_custom_call.1} parent=15 // pred_region
          %s117 = sand.u32 %s27, 1
          %s118 = scalar_lea.sflag [#allocation3], %s117
          %s119 = sand.u32 %s27, 1
          %s120 = smul.addr %s119, 32
          %s121 = scalar_lea.vmem [#allocation2], %s120
          %s122 = smul.u32 4, %s17
          %s124 = ssub.s32 512, 512
          %125 = vsyncadd %s118, %s124
          %s126 = smul.addr %s122, 128
          %s127 = scalar_lea.hbm %s0, %s126
          %s129 = sshll.u32 %s121, 4
          %s130 = int_to_ptr.vmem [resolvable:$true] %s129
          %132 = dma.hbm_to_vmem [thread:$0]  %s127, 512, %s130, %s118
        $region20: #{tpu_custom_call.1} parent=15 // pred_fallthru
          _
        // Predicated region
        $region21: #{tpu_custom_call.1} parent=15 // pred_check
          %p133 = pneg %p63
        $region22: #{tpu_custom_call.1} parent=15 // pred_check_branch
          %135 = sbr.rel (%p133) target = $region24
        $region23: #{tpu_custom_call.1} parent=15 // pred_region
          %s136 = sand.u32 %s53, 1
          %s137 = scalar_lea.sflag [#allocation6], %s136
          %s138 = sand.u32 %s53, 1
          %s139 = smul.addr %s138, 32
          %s140 = scalar_lea.vmem [#allocation5], %s139
          %s141 = smul.u32 4, %s17
          %s143 = ssub.s32 512, 512
          %144 = vsyncadd %s137, %s143
          %s145 = smul.addr %s141, 128
          %s146 = scalar_lea.hbm %s1, %s145
          %s148 = sshll.u32 %s140, 4
          %s149 = int_to_ptr.vmem [resolvable:$true] %s148
          %151 = dma.hbm_to_vmem [thread:$0]  %s146, 512, %s149, %s137
        $region24: #{tpu_custom_call.1} parent=15 // pred_fallthru
          _
      $region16: #{tpu_custom_call.1} parent=5 // pred_fallthru
        _
      %p152 = scmp.le.s32.totalorder 1, %s17
      %p153 = scmp.lt.s32.totalorder %s17, 3
      %p154 = pnand %p152, %p153
      %p155 = pneg %p154
      // Predicated region
      $region25: #{tpu_custom_call.1} parent=5 // pred_check
        _
      $region26: #{tpu_custom_call.1} parent=5 // pred_check_branch
        %157 = sbr.rel (%p154) target = $region28
      $region27: #{tpu_custom_call.1} parent=5 // pred_region
        %s158 = ssub.s32 %s17, 1
        %s159 = sand.u32 %s30, 1
        %s160 = scalar_lea.sflag [#allocation3], %s159
        %s161 = sand.u32 %s30, 1
        %s162 = smul.addr %s161, 32
        %s163 = scalar_lea.vmem [#allocation2], %s162
        // Predicated region
        $region29: #{tpu_custom_call.1} parent=27 // pred_check
          %p164 = pneg %p43
        $region30: #{tpu_custom_call.1} parent=27 // pred_check_branch
          %166 = sbr.rel (%p164) target = $region32
        $region31: #{tpu_custom_call.1} parent=27 // pred_region
          %167 = dma.done %s160, 512
        $region32: #{tpu_custom_call.1} parent=27 // pred_fallthru
          _
        %s168 = sand.u32 %s56, 1
        %s169 = scalar_lea.sflag [#allocation6], %s168
        %s170 = sand.u32 %s56, 1
        %s171 = smul.addr %s170, 32
        %s172 = scalar_lea.vmem [#allocation5], %s171
        // Predicated region
        $region33: #{tpu_custom_call.1} parent=27 // pred_check
          %p173 = pneg %p69
        $region34: #{tpu_custom_call.1} parent=27 // pred_check_branch
          %175 = sbr.rel (%p173) target = $region36
        $region35: #{tpu_custom_call.1} parent=27 // pred_region
          %176 = dma.done %s169, 512
        $region36: #{tpu_custom_call.1} parent=27 // pred_fallthru
          _
        %s177 = sand.u32 %s30, 1
        %s178 = scalar_lea.sflag [#allocation3], %s177
        %s179 = sand.u32 %s30, 1
        %s180 = smul.addr %s179, 32
        %s181 = scalar_lea.vmem [#allocation2], %s180
        %p182 = pneg %p43
        %p183 = pneg %p40
        %s184 = sand.u32 %s56, 1
        %s185 = scalar_lea.sflag [#allocation6], %s184
        %s186 = sand.u32 %s56, 1
        %s187 = smul.addr %s186, 32
        %s188 = scalar_lea.vmem [#allocation5], %s187
        %p189 = pneg %p69
        %p190 = pneg %p66
        %p191 = pneg %p95
        %p192 = pneg %p92
        %s193 = sand.u32 %s82, 1
        %s194 = scalar_lea.sflag [#allocation4], %s193
        %s195 = sand.u32 %s82, 1
        %s196 = smul.addr %s195, 64
        %s197 = scalar_lea.vmem [#allocation7], %s196
        %s198 = smul.u32 4, %s22
        %s199 = smul.u32 4, %s22
        %s200 = smul.u32 4, %s22
        %v201 = vld [vmem:[%s163] sm:$0xff]
        %v202 = vld [vmem:[%s163 + $0x8] sm:$0xff]
        %v203 = vld [vmem:[%s163 + $0x10] sm:$0xff]
        %v204 = vld [vmem:[%s163 + $0x18] sm:$0xff]
        %v205 = vld [vmem:[%s172] sm:$0xff]
        %v206 = vld [vmem:[%s172 + $0x8] sm:$0xff]
        %v207 = vld [vmem:[%s172 + $0x10] sm:$0xff]
        %v208 = vld [vmem:[%s172 + $0x18] sm:$0xff]
        %v209 = vlaneseq
        %v210 = vshrl.u32 %v209, 7
        %v211 = vsub.s32 7, %v210
        %v212 = vcvt.s32.f32 %v211
        %v213 = vmul.f32 %v212, 0.14285715
        %v218 = vrot.slane %v201, 1
        %v219 = vrot.slane %v202, 1
        %v220 = vrot.slane %v203, 1
        %v221 = vrot.slane %v204, 1
        %v226 = vadd.f32 %v201, %v218
        %v227 = vadd.f32 %v202, %v219
        %v228 = vadd.f32 %v203, %v220
        %v229 = vadd.f32 %v204, %v221
        %v230 = vmul.f32 %v226, 0.5
        %v231 = vmul.f32 %v227, 0.5
        %v232 = vmul.f32 %v228, 0.5
        %v233 = vmul.f32 %v229, 0.5
        %v234 = vadd.f32 %v205, 1e-05
        %v235 = vadd.f32 %v206, 1e-05
        %v236 = vadd.f32 %v207, 1e-05
        %v237 = vadd.f32 %v208, 1e-05
        %v242 = vrot.slane %v234, 1
        %v243 = vrot.slane %v235, 1
        %v244 = vrot.slane %v236, 1
        %v245 = vrot.slane %v237, 1
        %v250 = vadd.f32 %v234, %v242
        %v251 = vadd.f32 %v235, %v243
        %v252 = vadd.f32 %v236, %v244
        %v253 = vadd.f32 %v237, %v245
        %v254 = vrot.slane %v234, 2
        %v255 = vrot.slane %v235, 2
        %v256 = vrot.slane %v236, 2
        %v257 = vrot.slane %v237, 2
        %v262 = vadd.f32 %v250, %v254
        %v263 = vadd.f32 %v251, %v255
        %v264 = vadd.f32 %v252, %v256
        %v265 = vadd.f32 %v253, %v257
        %v266 = vrot.slane %v234, 3
        %v267 = vrot.slane %v235, 3
        %v268 = vrot.slane %v236, 3
        %v269 = vrot.slane %v237, 3
        %v274 = vadd.f32 %v262, %v266
        %v275 = vadd.f32 %v263, %v267
        %v276 = vadd.f32 %v264, %v268
        %v277 = vadd.f32 %v265, %v269
        %v278 = vrot.slane %v234, 4
        %v279 = vrot.slane %v235, 4
        %v280 = vrot.slane %v236, 4
        %v281 = vrot.slane %v237, 4
        %v286 = vadd.f32 %v274, %v278
        %v287 = vadd.f32 %v275, %v279
        %v288 = vadd.f32 %v276, %v280
        %v289 = vadd.f32 %v277, %v281
        %v290 = vrot.slane %v234, 5
        %v291 = vrot.slane %v235, 5
        %v292 = vrot.slane %v236, 5
        %v293 = vrot.slane %v237, 5
        %v298 = vadd.f32 %v286, %v290
        %v299 = vadd.f32 %v287, %v291
        %v300 = vadd.f32 %v288, %v292
        %v301 = vadd.f32 %v289, %v293
        %v302 = vrcp.pop %v298
        %v303 = vmul.f32 1.0, %v302
        %v304 = vrcp.pop %v299
        %v305 = vmul.f32 1.0, %v304
        %v306 = vrcp.pop %v300
        %v307 = vmul.f32 1.0, %v306
        %v308 = vrcp.pop %v301
        %v309 = vmul.f32 1.0, %v308
        %v310 = vmul.f32 %v234, %v303
        %v311 = vmul.f32 %v235, %v305
        %v312 = vmul.f32 %v236, %v307
        %v313 = vmul.f32 %v237, %v309
        %v318 = vrot.slane %v303, 7
        %v319 = vrot.slane %v305, 7
        %v320 = vrot.slane %v307, 7
        %v321 = vrot.slane %v309, 7
        %v326 = vmul.f32 %v234, %v318
        %v327 = vmul.f32 %v235, %v319
        %v328 = vmul.f32 %v236, %v320
        %v329 = vmul.f32 %v237, %v321
        %v330 = vrot.slane %v303, 6
        %v331 = vrot.slane %v305, 6
        %v332 = vrot.slane %v307, 6
        %v333 = vrot.slane %v309, 6
        %v338 = vmul.f32 %v234, %v330
        %v339 = vmul.f32 %v235, %v331
        %v340 = vmul.f32 %v236, %v332
        %v341 = vmul.f32 %v237, %v333
        %v342 = vrot.slane %v303, 5
        %v343 = vrot.slane %v305, 5
        %v344 = vrot.slane %v307, 5
        %v345 = vrot.slane %v309, 5
        %v350 = vmul.f32 %v234, %v342
        %v351 = vmul.f32 %v235, %v343
        %v352 = vmul.f32 %v236, %v344
        %v353 = vmul.f32 %v237, %v345
        %v354 = vrot.slane %v303, 4
        %v355 = vrot.slane %v305, 4
        %v356 = vrot.slane %v307, 4
        %v357 = vrot.slane %v309, 4
        %v362 = vmul.f32 %v234, %v354
        %v363 = vmul.f32 %v235, %v355
        %v364 = vmul.f32 %v236, %v356
        %v365 = vmul.f32 %v237, %v357
        %v366 = vrot.slane %v303, 3
        %v367 = vrot.slane %v305, 3
        %v368 = vrot.slane %v307, 3
        %v369 = vrot.slane %v309, 3
        %v374 = vmul.f32 %v234, %v366
        %v375 = vmul.f32 %v235, %v367
        %v376 = vmul.f32 %v236, %v368
        %v377 = vmul.f32 %v237, %v369
        %v378 = vlaneseq
        %v379 = vshrl.u32 %v378, 7
        %v380 = vsub.s32 0, %v379
        %v381 = vrot.slane %v230, %v380
        %v382 = vlaneseq
        %v383 = vshrl.u32 %v382, 7
        %v384 = vsub.s32 0, %v383
        %v385 = vrot.slane %v231, %v384
        %v386 = vlaneseq
        %v387 = vshrl.u32 %v386, 7
        %v388 = vsub.s32 0, %v387
        %v389 = vrot.slane %v232, %v388
        %v390 = vlaneseq
        %v391 = vshrl.u32 %v390, 7
        %v392 = vsub.s32 0, %v391
        %v393 = vrot.slane %v233, %v392
        %v394 = vlaneseq
        %v395 = vshrl.u32 %v394, 7
        %v396 = vsub.s32 1, %v395
        %v397 = vrot.slane %v310, %v396
        %v398 = vlaneseq
        %v399 = vshrl.u32 %v398, 7
        %v400 = vsub.s32 1, %v399
        %v401 = vrot.slane %v311, %v400
        %v402 = vlaneseq
        %v403 = vshrl.u32 %v402, 7
        %v404 = vsub.s32 1, %v403
        %v405 = vrot.slane %v312, %v404
        %v406 = vlaneseq
        %v407 = vshrl.u32 %v406, 7
        %v408 = vsub.s32 1, %v407
        %v409 = vrot.slane %v313, %v408
        %v410 = vlaneseq
        %v411 = vshrl.u32 %v410, 7
        %v412 = vsub.s32 1, %v411
        %v413 = vrot.slane %v230, %v412
        %v414 = vlaneseq
        %v415 = vshrl.u32 %v414, 7
        %v416 = vsub.s32 1, %v415
        %v417 = vrot.slane %v231, %v416
        %v418 = vlaneseq
        %v419 = vshrl.u32 %v418, 7
        %v420 = vsub.s32 1, %v419
        %v421 = vrot.slane %v232, %v420
        %v422 = vlaneseq
        %v423 = vshrl.u32 %v422, 7
        %v424 = vsub.s32 1, %v423
        %v425 = vrot.slane %v233, %v424
        %vm426 = vcmp.ge.f32.partialorder %v213, %v397
        %vm427 = vcmp.ge.f32.partialorder %v213, %v401
        %vm428 = vcmp.ge.f32.partialorder %v213, %v405
        %vm429 = vcmp.ge.f32.partialorder %v213, %v409
        %v430 = vsel %vm426, %v397, 0.0
        %v431 = vsel %vm427, %v401, 0.0
        %v432 = vsel %vm428, %v405, 0.0
        %v433 = vsel %vm429, %v409, 0.0
        %v434 = vsel %vm426, %v413, %v381
        %v435 = vsel %vm427, %v417, %v385
        %v436 = vsel %vm428, %v421, %v389
        %v437 = vsel %vm429, %v425, %v393
        %v442 = vrot.slane %v326, 1
        %v443 = vrot.slane %v327, 1
        %v444 = vrot.slane %v328, 1
        %v445 = vrot.slane %v329, 1
        %v450 = vadd.f32 %v310, %v442
        %v451 = vadd.f32 %v311, %v443
        %v452 = vadd.f32 %v312, %v444
        %v453 = vadd.f32 %v313, %v445
        %v454 = vlaneseq
        %v455 = vshrl.u32 %v454, 7
        %v456 = vsub.s32 1, %v455
        %v457 = vrot.slane %v450, %v456
        %v458 = vlaneseq
        %v459 = vshrl.u32 %v458, 7
        %v460 = vsub.s32 1, %v459
        %v461 = vrot.slane %v451, %v460
        %v462 = vlaneseq
        %v463 = vshrl.u32 %v462, 7
        %v464 = vsub.s32 1, %v463
        %v465 = vrot.slane %v452, %v464
        %v466 = vlaneseq
        %v467 = vshrl.u32 %v466, 7
        %v468 = vsub.s32 1, %v467
        %v469 = vrot.slane %v453, %v468
        %v470 = vsel %vm426, %v457, %v397
        %v471 = vsel %vm427, %v461, %v401
        %v472 = vsel %vm428, %v465, %v405
        %v473 = vsel %vm429, %v469, %v409
        %v474 = vlaneseq
        %v475 = vshrl.u32 %v474, 7
        %v476 = vsub.s32 2, %v475
        %v477 = vrot.slane %v230, %v476
        %v478 = vlaneseq
        %v479 = vshrl.u32 %v478, 7
        %v480 = vsub.s32 2, %v479
        %v481 = vrot.slane %v231, %v480
        %v482 = vlaneseq
        %v483 = vshrl.u32 %v482, 7
        %v484 = vsub.s32 2, %v483
        %v485 = vrot.slane %v232, %v484
        %v486 = vlaneseq
        %v487 = vshrl.u32 %v486, 7
        %v488 = vsub.s32 2, %v487
        %v489 = vrot.slane %v233, %v488
        %v490 = vsel %vm426, %v477, %v413
        %v491 = vsel %vm427, %v481, %v417
        %v492 = vsel %vm428, %v485, %v421
        %v493 = vsel %vm429, %v489, %v425
        %vm494 = vcmp.ge.f32.partialorder %v213, %v457
        %vm495 = vcmp.ge.f32.partialorder %v213, %v461
        %vm496 = vcmp.ge.f32.partialorder %v213, %v465
        %vm497 = vcmp.ge.f32.partialorder %v213, %v469
        %v498 = vsel %vm494, %v457, %v430
        %v499 = vsel %vm495, %v461, %v431
        %v500 = vsel %vm496, %v465, %v432
        %v501 = vsel %vm497, %v469, %v433
        %v502 = vsel %vm494, %v477, %v434
        %v503 = vsel %vm495, %v481, %v435
        %v504 = vsel %vm496, %v485, %v436
        %v505 = vsel %vm497, %v489, %v437
        %v510 = vrot.slane %v338, 2
        %v511 = vrot.slane %v339, 2
        %v512 = vrot.slane %v340, 2
        %v513 = vrot.slane %v341, 2
        %v518 = vadd.f32 %v450, %v510
        %v519 = vadd.f32 %v451, %v511
        %v520 = vadd.f32 %v452, %v512
        %v521 = vadd.f32 %v453, %v513
        %v522 = vlaneseq
        %v523 = vshrl.u32 %v522, 7
        %v524 = vsub.s32 1, %v523
        %v525 = vrot.slane %v518, %v524
        %v526 = vlaneseq
        %v527 = vshrl.u32 %v526, 7
        %v528 = vsub.s32 1, %v527
        %v529 = vrot.slane %v519, %v528
        %v530 = vlaneseq
        %v531 = vshrl.u32 %v530, 7
        %v532 = vsub.s32 1, %v531
        %v533 = vrot.slane %v520, %v532
        %v534 = vlaneseq
        %v535 = vshrl.u32 %v534, 7
        %v536 = vsub.s32 1, %v535
        %v537 = vrot.slane %v521, %v536
        %v538 = vsel %vm494, %v525, %v470
        %v539 = vsel %vm495, %v529, %v471
        %v540 = vsel %vm496, %v533, %v472
        %v541 = vsel %vm497, %v537, %v473
        %v542 = vlaneseq
        %v543 = vshrl.u32 %v542, 7
        %v544 = vsub.s32 3, %v543
        %v545 = vrot.slane %v230, %v544
        %v546 = vlaneseq
        %v547 = vshrl.u32 %v546, 7
        %v548 = vsub.s32 3, %v547
        %v549 = vrot.slane %v231, %v548
        %v550 = vlaneseq
        %v551 = vshrl.u32 %v550, 7
        %v552 = vsub.s32 3, %v551
        %v553 = vrot.slane %v232, %v552
        %v554 = vlaneseq
        %v555 = vshrl.u32 %v554, 7
        %v556 = vsub.s32 3, %v555
        %v557 = vrot.slane %v233, %v556
        %v558 = vsel %vm494, %v545, %v490
        %v559 = vsel %vm495, %v549, %v491
        %v560 = vsel %vm496, %v553, %v492
        %v561 = vsel %vm497, %v557, %v493
        %vm562 = vcmp.ge.f32.partialorder %v213, %v525
        %vm563 = vcmp.ge.f32.partialorder %v213, %v529
        %vm564 = vcmp.ge.f32.partialorder %v213, %v533
        %vm565 = vcmp.ge.f32.partialorder %v213, %v537
        %v566 = vsel %vm562, %v525, %v498
        %v567 = vsel %vm563, %v529, %v499
        %v568 = vsel %vm564, %v533, %v500
        %v569 = vsel %vm565, %v537, %v501
        %v570 = vsel %vm562, %v545, %v502
        %v571 = vsel %vm563, %v549, %v503
        %v572 = vsel %vm564, %v553, %v504
        %v573 = vsel %vm565, %v557, %v505
        %v578 = vrot.slane %v350, 3
        %v579 = vrot.slane %v351, 3
        %v580 = vrot.slane %v352, 3
        %v581 = vrot.slane %v353, 3
        %v586 = vadd.f32 %v518, %v578
        %v587 = vadd.f32 %v519, %v579
        %v588 = vadd.f32 %v520, %v580
        %v589 = vadd.f32 %v521, %v581
        %v590 = vlaneseq
        %v591 = vshrl.u32 %v590, 7
        %v592 = vsub.s32 1, %v591
        %v593 = vrot.slane %v586, %v592
        %v594 = vlaneseq
        %v595 = vshrl.u32 %v594, 7
        %v596 = vsub.s32 1, %v595
        %v597 = vrot.slane %v587, %v596
        %v598 = vlaneseq
        %v599 = vshrl.u32 %v598, 7
        %v600 = vsub.s32 1, %v599
        %v601 = vrot.slane %v588, %v600
        %v602 = vlaneseq
        %v603 = vshrl.u32 %v602, 7
        %v604 = vsub.s32 1, %v603
        %v605 = vrot.slane %v589, %v604
        %v606 = vsel %vm562, %v593, %v538
        %v607 = vsel %vm563, %v597, %v539
        %v608 = vsel %vm564, %v601, %v540
        %v609 = vsel %vm565, %v605, %v541
        %v610 = vlaneseq
        %v611 = vshrl.u32 %v610, 7
        %v612 = vsub.s32 4, %v611
        %v613 = vrot.slane %v230, %v612
        %v614 = vlaneseq
        %v615 = vshrl.u32 %v614, 7
        %v616 = vsub.s32 4, %v615
        %v617 = vrot.slane %v231, %v616
        %v618 = vlaneseq
        %v619 = vshrl.u32 %v618, 7
        %v620 = vsub.s32 4, %v619
        %v621 = vrot.slane %v232, %v620
        %v622 = vlaneseq
        %v623 = vshrl.u32 %v622, 7
        %v624 = vsub.s32 4, %v623
        %v625 = vrot.slane %v233, %v624
        %v626 = vsel %vm562, %v613, %v558
        %v627 = vsel %vm563, %v617, %v559
        %v628 = vsel %vm564, %v621, %v560
        %v629 = vsel %vm565, %v625, %v561
        %vm630 = vcmp.ge.f32.partialorder %v213, %v593
        %vm631 = vcmp.ge.f32.partialorder %v213, %v597
        %vm632 = vcmp.ge.f32.partialorder %v213, %v601
        %vm633 = vcmp.ge.f32.partialorder %v213, %v605
        %v634 = vsel %vm630, %v593, %v566
        %v635 = vsel %vm631, %v597, %v567
        %v636 = vsel %vm632, %v601, %v568
        %v637 = vsel %vm633, %v605, %v569
        %v638 = vsel %vm630, %v613, %v570
        %v639 = vsel %vm631, %v617, %v571
        %v640 = vsel %vm632, %v621, %v572
        %v641 = vsel %vm633, %v625, %v573
        %v646 = vrot.slane %v362, 4
        %v647 = vrot.slane %v363, 4
        %v648 = vrot.slane %v364, 4
        %v649 = vrot.slane %v365, 4
        %v654 = vadd.f32 %v586, %v646
        %v655 = vadd.f32 %v587, %v647
        %v656 = vadd.f32 %v588, %v648
        %v657 = vadd.f32 %v589, %v649
        %v658 = vlaneseq
        %v659 = vshrl.u32 %v658, 7
        %v660 = vsub.s32 1, %v659
        %v661 = vrot.slane %v654, %v660
        %v662 = vlaneseq
        %v663 = vshrl.u32 %v662, 7
        %v664 = vsub.s32 1, %v663
        %v665 = vrot.slane %v655, %v664
        %v666 = vlaneseq
        %v667 = vshrl.u32 %v666, 7
        %v668 = vsub.s32 1, %v667
        %v669 = vrot.slane %v656, %v668
        %v670 = vlaneseq
        %v671 = vshrl.u32 %v670, 7
        %v672 = vsub.s32 1, %v671
        %v673 = vrot.slane %v657, %v672
        %v674 = vsel %vm630, %v661, %v606
        %v675 = vsel %vm631, %v665, %v607
        %v676 = vsel %vm632, %v669, %v608
        %v677 = vsel %vm633, %v673, %v609
        %v678 = vlaneseq
        %v679 = vshrl.u32 %v678, 7
        %v680 = vsub.s32 5, %v679
        %v681 = vrot.slane %v230, %v680
        %v682 = vlaneseq
        %v683 = vshrl.u32 %v682, 7
        %v684 = vsub.s32 5, %v683
        %v685 = vrot.slane %v231, %v684
        %v686 = vlaneseq
        %v687 = vshrl.u32 %v686, 7
        %v688 = vsub.s32 5, %v687
        %v689 = vrot.slane %v232, %v688
        %v690 = vlaneseq
        %v691 = vshrl.u32 %v690, 7
        %v692 = vsub.s32 5, %v691
        %v693 = vrot.slane %v233, %v692
        %v694 = vsel %vm630, %v681, %v626
        %v695 = vsel %vm631, %v685, %v627
        %v696 = vsel %vm632, %v689, %v628
        %v697 = vsel %vm633, %v693, %v629
        %vm698 = vcmp.ge.f32.partialorder %v213, %v661
        %vm699 = vcmp.ge.f32.partialorder %v213, %v665
        %vm700 = vcmp.ge.f32.partialorder %v213, %v669
        %vm701 = vcmp.ge.f32.partialorder %v213, %v673
        %v702 = vsel %vm698, %v661, %v634
        %v703 = vsel %vm699, %v665, %v635
        %v704 = vsel %vm700, %v669, %v636
        %v705 = vsel %vm701, %v673, %v637
        %v706 = vsel %vm698, %v681, %v638
        %v707 = vsel %vm699, %v685, %v639
        %v708 = vsel %vm700, %v689, %v640
        %v709 = vsel %vm701, %v693, %v641
        %v714 = vrot.slane %v374, 5
        %v715 = vrot.slane %v375, 5
        %v716 = vrot.slane %v376, 5
        %v717 = vrot.slane %v377, 5
        %v722 = vadd.f32 %v654, %v714
        %v723 = vadd.f32 %v655, %v715
        %v724 = vadd.f32 %v656, %v716
        %v725 = vadd.f32 %v657, %v717
        %v726 = vlaneseq
        %v727 = vshrl.u32 %v726, 7
        %v728 = vsub.s32 1, %v727
        %v729 = vrot.slane %v722, %v728
        %v730 = vlaneseq
        %v731 = vshrl.u32 %v730, 7
        %v732 = vsub.s32 1, %v731
        %v733 = vrot.slane %v723, %v732
        %v734 = vlaneseq
        %v735 = vshrl.u32 %v734, 7
        %v736 = vsub.s32 1, %v735
        %v737 = vrot.slane %v724, %v736
        %v738 = vlaneseq
        %v739 = vshrl.u32 %v738, 7
        %v740 = vsub.s32 1, %v739
        %v741 = vrot.slane %v725, %v740
        %v742 = vsel %vm698, %v729, %v674
        %v743 = vsel %vm699, %v733, %v675
        %v744 = vsel %vm700, %v737, %v676
        %v745 = vsel %vm701, %v741, %v677
        %v746 = vlaneseq
        %v747 = vshrl.u32 %v746, 7
        %v748 = vsub.s32 6, %v747
        %v749 = vrot.slane %v230, %v748
        %v750 = vlaneseq
        %v751 = vshrl.u32 %v750, 7
        %v752 = vsub.s32 6, %v751
        %v753 = vrot.slane %v231, %v752
        %v754 = vlaneseq
        %v755 = vshrl.u32 %v754, 7
        %v756 = vsub.s32 6, %v755
        %v757 = vrot.slane %v232, %v756
        %v758 = vlaneseq
        %v759 = vshrl.u32 %v758, 7
        %v760 = vsub.s32 6, %v759
        %v761 = vrot.slane %v233, %v760
        %v762 = vsel %vm698, %v749, %v694
        %v763 = vsel %vm699, %v753, %v695
        %v764 = vsel %vm700, %v757, %v696
        %v765 = vsel %vm701, %v761, %v697
        %vm766 = vcmp.ge.f32.partialorder %v213, %v729
        %vm767 = vcmp.ge.f32.partialorder %v213, %v733
        %vm768 = vcmp.ge.f32.partialorder %v213, %v737
        %vm769 = vcmp.ge.f32.partialorder %v213, %v741
        %v770 = vsel %vm766, %v729, %v702
        %v771 = vsel %vm767, %v733, %v703
        %v772 = vsel %vm768, %v737, %v704
        %v773 = vsel %vm769, %v741, %v705
        %v774 = vsel %vm766, %v749, %v706
        %v775 = vsel %vm767, %v753, %v707
        %v776 = vsel %vm768, %v757, %v708
        %v777 = vsel %vm769, %v761, %v709
        %v778 = vsel %vm766, %v729, %v742
        %v779 = vsel %vm767, %v733, %v743
        %v780 = vsel %vm768, %v737, %v744
        %v781 = vsel %vm769, %v741, %v745
        %v782 = vsel %vm766, %v749, %v762
        %v783 = vsel %vm767, %v753, %v763
        %v784 = vsel %vm768, %v757, %v764
        %v785 = vsel %vm769, %v761, %v765
        %v786 = vsub.f32 %v778, %v770
        %v787 = vsub.f32 %v779, %v771
        %v788 = vsub.f32 %v780, %v772
        %v789 = vsub.f32 %v781, %v773
        %vm790 = vcmp.lt.f32.partialorder %v786, 1e-05
        %vm791 = vcmp.lt.f32.partialorder %v787, 1e-05
        %vm792 = vcmp.lt.f32.partialorder %v788, 1e-05
        %vm793 = vcmp.lt.f32.partialorder %v789, 1e-05
        %v794 = vsel %vm790, 1.0, %v786
        %v795 = vsel %vm791, 1.0, %v787
        %v796 = vsel %vm792, 1.0, %v788
        %v797 = vsel %vm793, 1.0, %v789
        %v798 = vsub.f32 %v213, %v770
        %v799 = vsub.f32 %v213, %v771
        %v800 = vsub.f32 %v213, %v772
        %v801 = vsub.f32 %v213, %v773
        %v802 = vrcp.pop %v794
        %v803 = vmul.f32 %v798, %v802
        %v804 = vrcp.pop %v795
        %v805 = vmul.f32 %v799, %v804
        %v806 = vrcp.pop %v796
        %v807 = vmul.f32 %v800, %v806
        %v808 = vrcp.pop %v797
        %v809 = vmul.f32 %v801, %v808
        %v810 = vsub.f32 %v782, %v774
        %v811 = vsub.f32 %v783, %v775
        %v812 = vsub.f32 %v784, %v776
        %v813 = vsub.f32 %v785, %v777
        %v814 = vmul.f32 %v803, %v810
        %v815 = vmul.f32 %v805, %v811
        %v816 = vmul.f32 %v807, %v812
        %v817 = vmul.f32 %v809, %v813
        %v818 = vadd.f32 %v774, %v814
        %v819 = vadd.f32 %v775, %v815
        %v820 = vadd.f32 %v776, %v816
        %v821 = vadd.f32 %v777, %v817
        %v822 = vadd.s32 %v210, 8
        %v823 = vand.u32 %v210, 8
        %v824 = vand.u32 %v822, 8
        %vm825 = vcmp.eq.s32.totalorder %v823, 0
        %vm826 = vcmp.eq.s32.totalorder %v824, 0
        %v827 = vmin.f32 %v201, %v818
        %v828 = vmin.f32 %v202, %v819
        %v829 = vmin.f32 %v203, %v820
        %v830 = vmin.f32 %v204, %v821
        %v831 = vmax.f32 %v201, %v818
        %v832 = vmax.f32 %v202, %v819
        %v833 = vmax.f32 %v203, %v820
        %v834 = vmax.f32 %v204, %v821
        %v835 = vsel %vm825, %v827, %v831
        %v836 = vsel %vm825, %v828, %v832
        %v837 = vsel %vm825, %v829, %v833
        %v838 = vsel %vm825, %v830, %v834
        %v839 = vsel %vm826, %v827, %v831
        %v840 = vsel %vm826, %v828, %v832
        %v841 = vsel %vm826, %v829, %v833
        %v842 = vsel %vm826, %v830, %v834
        %vm851 = vcmask 1043456
        %v852 = vrot.slane %v835, 4
        %v853 = vrot.slane %v839, 4
        %v854 = vsel %vm851, %v852, %v853
        %v855 = vrot.slane %v836, 4
        %v856 = vrot.slane %v840, 4
        %v857 = vsel %vm851, %v855, %v856
        %v858 = vrot.slane %v837, 4
        %v859 = vrot.slane %v841, 4
        %v860 = vsel %vm851, %v858, %v859
        %v861 = vrot.slane %v838, 4
        %v862 = vrot.slane %v842, 4
        %v863 = vsel %vm851, %v861, %v862
        %v876 = vsel %vm851, %v853, %v852
        %v877 = vsel %vm851, %v856, %v855
        %v878 = vsel %vm851, %v859, %v858
        %v879 = vsel %vm851, %v862, %v861
        %v880 = vand.u32 %v210, 4
        %v881 = vand.u32 %v822, 4
        %vm882 = vcmp.eq.s32.totalorder %v880, 0
        %vm883 = vcmp.eq.s32.totalorder %v881, 0
        %v884 = vmin.f32 %v835, %v854
        %v885 = vmin.f32 %v836, %v857
        %v886 = vmin.f32 %v837, %v860
        %v887 = vmin.f32 %v838, %v863
        %v888 = vmin.f32 %v839, %v876
        %v889 = vmin.f32 %v840, %v877
        %v890 = vmin.f32 %v841, %v878
        %v891 = vmin.f32 %v842, %v879
        %v892 = vmax.f32 %v835, %v876
        %v893 = vmax.f32 %v836, %v877
        %v894 = vmax.f32 %v837, %v878
        %v895 = vmax.f32 %v838, %v879
        %v896 = vmax.f32 %v839, %v854
        %v897 = vmax.f32 %v840, %v857
        %v898 = vmax.f32 %v841, %v860
        %v899 = vmax.f32 %v842, %v863
        %v900 = vsel %vm882, %v884, %v892
        %v901 = vsel %vm882, %v885, %v893
        %v902 = vsel %vm882, %v886, %v894
        %v903 = vsel %vm882, %v887, %v895
        %v904 = vsel %vm883, %v888, %v896
        %v905 = vsel %vm883, %v889, %v897
        %v906 = vsel %vm883, %v890, %v898
        %v907 = vsel %vm883, %v891, %v899
        %vm916 = vcmask 1045504
        %v917 = vrot.slane %v900, 2
        %v918 = vrot.slane %v904, 2
        %v919 = vsel %vm916, %v917, %v918
        %v920 = vrot.slane %v901, 2
        %v921 = vrot.slane %v905, 2
        %v922 = vsel %vm916, %v920, %v921
        %v923 = vrot.slane %v902, 2
        %v924 = vrot.slane %v906, 2
        %v925 = vsel %vm916, %v923, %v924
        %v926 = vrot.slane %v903, 2
        %v927 = vrot.slane %v907, 2
        %v928 = vsel %vm916, %v926, %v927
        %v941 = vsel %vm916, %v918, %v917
        %v942 = vsel %vm916, %v921, %v920
        %v943 = vsel %vm916, %v924, %v923
        %v944 = vsel %vm916, %v927, %v926
        %v945 = vrot.slane %v904, 6
        %v946 = vrot.slane %v905, 6
        %v947 = vrot.slane %v906, 6
        %v948 = vrot.slane %v907, 6
        %vm953 = vcmask 1041408
        %v954 = vrot.slane %v900, 6
        %v955 = vrot.slane %v901, 6
        %v956 = vrot.slane %v902, 6
        %v957 = vrot.slane %v903, 6
        %v958 = vsel %vm953, %v954, %v945
        %v959 = vsel %vm953, %v955, %v946
        %v960 = vsel %vm953, %v956, %v947
        %v961 = vsel %vm953, %v957, %v948
        %v970 = vsel %vm953, %v945, %v954
        %v971 = vsel %vm953, %v946, %v955
        %v972 = vsel %vm953, %v947, %v956
        %v973 = vsel %vm953, %v948, %v957
        %v974 = vand.u32 %v210, 2
        %v975 = vand.u32 %v822, 2
        %vm976 = vcmp.eq.s32.totalorder %v974, 0
        %vm977 = vcmp.eq.s32.totalorder %v975, 0
        %v978 = vmin.f32 %v900, %v919
        %v979 = vmin.f32 %v901, %v922
        %v980 = vmin.f32 %v902, %v925
        %v981 = vmin.f32 %v903, %v928
        %v982 = vmin.f32 %v904, %v941
        %v983 = vmin.f32 %v905, %v942
        %v984 = vmin.f32 %v906, %v943
        %v985 = vmin.f32 %v907, %v944
        %v986 = vmax.f32 %v900, %v970
        %v987 = vmax.f32 %v901, %v971
        %v988 = vmax.f32 %v902, %v972
        %v989 = vmax.f32 %v903, %v973
        %v990 = vmax.f32 %v904, %v958
        %v991 = vmax.f32 %v905, %v959
        %v992 = vmax.f32 %v906, %v960
        %v993 = vmax.f32 %v907, %v961
        %v994 = vsel %vm976, %v978, %v986
        %v995 = vsel %vm976, %v979, %v987
        %v996 = vsel %vm976, %v980, %v988
        %v997 = vsel %vm976, %v981, %v989
        %v998 = vsel %vm977, %v982, %v990
        %v999 = vsel %vm977, %v983, %v991
        %v1000 = vsel %vm977, %v984, %v992
        %v1001 = vsel %vm977, %v985, %v993
        %vm1010 = vcmask 1046528
        %v1011 = vrot.slane %v994, 1
        %v1012 = vrot.slane %v998, 1
        %v1013 = vsel %vm1010, %v1011, %v1012
        %v1014 = vrot.slane %v995, 1
        %v1015 = vrot.slane %v999, 1
        %v1016 = vsel %vm1010, %v1014, %v1015
        %v1017 = vrot.slane %v996, 1
        %v1018 = vrot.slane %v1000, 1
        %v1019 = vsel %vm1010, %v1017, %v1018
        %v1020 = vrot.slane %v997, 1
        %v1021 = vrot.slane %v1001, 1
        %v1022 = vsel %vm1010, %v1020, %v1021
        %v1035 = vsel %vm1010, %v1012, %v1011
        %v1036 = vsel %vm1010, %v1015, %v1014
        %v1037 = vsel %vm1010, %v1018, %v1017
        %v1038 = vsel %vm1010, %v1021, %v1020
        %v1039 = vrot.slane %v998, 7
        %v1040 = vrot.slane %v999, 7
        %v1041 = vrot.slane %v1000, 7
        %v1042 = vrot.slane %v1001, 7
        %vm1047 = vcmask 1040384
        %v1048 = vrot.slane %v994, 7
        %v1049 = vrot.slane %v995, 7
        %v1050 = vrot.slane %v996, 7
        %v1051 = vrot.slane %v997, 7
        %v1052 = vsel %vm1047, %v1048, %v1039
        %v1053 = vsel %vm1047, %v1049, %v1040
        %v1054 = vsel %vm1047, %v1050, %v1041
        %v1055 = vsel %vm1047, %v1051, %v1042
        %v1064 = vsel %vm1047, %v1039, %v1048
        %v1065 = vsel %vm1047, %v1040, %v1049
        %v1066 = vsel %vm1047, %v1041, %v1050
        %v1067 = vsel %vm1047, %v1042, %v1051
        %v1068 = vand.u32 %v210, 1
        %v1069 = vand.u32 %v822, 1
        %vm1070 = vcmp.eq.s32.totalorder %v1068, 0
        %vm1071 = vcmp.eq.s32.totalorder %v1069, 0
        %v1072 = vmin.f32 %v994, %v1013
        %v1073 = vmin.f32 %v995, %v1016
        %v1074 = vmin.f32 %v996, %v1019
        %v1075 = vmin.f32 %v997, %v1022
        %v1076 = vmin.f32 %v998, %v1035
        %v1077 = vmin.f32 %v999, %v1036
        %v1078 = vmin.f32 %v1000, %v1037
        %v1079 = vmin.f32 %v1001, %v1038
        %v1080 = vmax.f32 %v994, %v1064
        %v1081 = vmax.f32 %v995, %v1065
        %v1082 = vmax.f32 %v996, %v1066
        %v1083 = vmax.f32 %v997, %v1067
        %v1084 = vmax.f32 %v998, %v1052
        %v1085 = vmax.f32 %v999, %v1053
        %v1086 = vmax.f32 %v1000, %v1054
        %v1087 = vmax.f32 %v1001, %v1055
        %v1088 = vsel %vm1070, %v1072, %v1080
        %v1089 = vsel %vm1070, %v1073, %v1081
        %v1090 = vsel %vm1070, %v1074, %v1082
        %v1091 = vsel %vm1070, %v1075, %v1083
        %v1092 = vsel %vm1071, %v1076, %v1084
        %v1093 = vsel %vm1071, %v1077, %v1085
        %v1094 = vsel %vm1071, %v1078, %v1086
        %v1095 = vsel %vm1071, %v1079, %v1087
        %1096 = vst [vmem:[%s197] sm:$0xff] %v1088
        %1097 = vst [vmem:[%s197 + $0x8] sm:$0xff] %v1089
        %1098 = vst [vmem:[%s197 + $0x10] sm:$0xff] %v1090
        %1099 = vst [vmem:[%s197 + $0x18] sm:$0xff] %v1091
        %1100 = vst [vmem:[%s197 + $0x20] sm:$0xff] %v1092
        %1101 = vst [vmem:[%s197 + $0x28] sm:$0xff] %v1093
        %1102 = vst [vmem:[%s197 + $0x30] sm:$0xff] %v1094
        %1103 = vst [vmem:[%s197 + $0x38] sm:$0xff] %v1095
        %s1104 = sand.u32 %s82, 1
        %s1105 = scalar_lea.sflag [#allocation4], %s1104
        %s1106 = sand.u32 %s82, 1
        %s1107 = smul.addr %s1106, 64
        %s1108 = scalar_lea.vmem [#allocation7], %s1107
        // Predicated region
        $region37: #{tpu_custom_call.1} parent=27 // pred_check
          %p1109 = pneg %p92
        $region38: #{tpu_custom_call.1} parent=27 // pred_check_branch
          %1111 = sbr.rel (%p1109) target = $region40
        $region39: #{tpu_custom_call.1} parent=27 // pred_region
          %s1112 = smul.u32 4, %s22
          %s1114 = ssub.s32 1024, 1024
          %1115 = vsyncadd %s1105, %s1114
          %s1116 = smul.addr %s1112, 128
          %s1117 = scalar_lea.hbm %s2, %s1116
          %s1118 = sshll.u32 %s1108, 4
          %s1119 = int_to_ptr.vmem [resolvable:$true] %s1118
          %1124 = dma.vmem_to_hbm [thread:$0]  %s1119, 1024, %s1117, %s1105, 512, 1024, 32
        $region40: #{tpu_custom_call.1} parent=27 // pred_fallthru
          _
      $region28: #{tpu_custom_call.1} parent=5 // pred_fallthru
        _
      %p1125 = scmp.le.s32.totalorder 2, %s17
      // Predicated region
      $region41: #{tpu_custom_call.1} parent=5 // pred_check
        %p1126 = pneg %p1125
      $region42: #{tpu_custom_call.1} parent=5 // pred_check_branch
        %1128 = sbr.rel (%p1126) target = $region44
      $region43: #{tpu_custom_call.1} parent=5 // pred_region
        %s1129 = ssub.s32 %s17, 2
        // Predicated region
        $region45: #{tpu_custom_call.1} parent=43 // pred_check
          %p1130 = pneg %p98
        $region46: #{tpu_custom_call.1} parent=43 // pred_check_branch
          %1132 = sbr.rel (%p1130) target = $region48
        $region47: #{tpu_custom_call.1} parent=43 // pred_region
          %s1133 = sand.u32 %s83, 1
          %s1134 = scalar_lea.sflag [#allocation4], %s1133
          %s1135 = sand.u32 %s83, 1
          %s1136 = smul.addr %s1135, 64
          %s1137 = scalar_lea.vmem [#allocation7], %s1136
          %1138 = dma.done %s1134, 1024
        $region48: #{tpu_custom_call.1} parent=43 // pred_fallthru
          _
      $region44: #{tpu_custom_call.1} parent=5 // pred_fallthru
        _
    $region6: #{tpu_custom_call.1} parent=1 // loop_footer
      %s21 = sadd.s32 1, %s17
    $region7: #{tpu_custom_call.1} parent=1 // loop_footer_branch
      %16 = sbr.rel target = $region3
    $region8: #{tpu_custom_call.1} parent=1 // loop_exit
      _
    %1139 = vsyncpa [#allocation3], 1
    %s1140 = scalar_lea.sflag [#allocation3], 1
    %1141 = vsyncpa %s1140, 1
    %1142 = vsyncpa [#allocation6], 1
    %s1143 = scalar_lea.sflag [#allocation6], 1
    %1144 = vsyncpa %s1143, 1
    %1145 = vsyncpa [#allocation4], 1
    %s1146 = scalar_lea.sflag [#allocation4], 1
    %1147 = vsyncpa %s1146, 1

</llo_original>
